<compile_context>
chip_gen: v7x
topology: tpu7x:2x2x1
jax: 0.10.0
libtpu: 0.0.40
codegen_flags: <defaults>
</compile_context>

<pallas_src>
import numpy as np
import jax
import jax.numpy as jnp
from jax import lax
from jax.experimental import pallas as pl
from jax.experimental.pallas import tpu as pltpu


# ---------------------------------------------------------------------------
# helpers
# ---------------------------------------------------------------------------

def _pool_anchor_rows(row_stride, Hout, Wout):
    """Rows of the 'anchored' pooled-sum tensor emitted by a pool block.

    The pooled output (i, j) lives at flat anchor f = 2*i*row_stride + 2*j;
    the kernel emits rows [0, Lp) with Lp covering the largest anchor."""
    return (2 * Hout - 2) * row_stride + 2 * Wout - 1


def _leaky_relu(x):
    return jnp.where(x >= 0.0, x, 0.2 * x)


# ---------------------------------------------------------------------------
# kernel builders
# ---------------------------------------------------------------------------

def _make_patch_block_call(N, Ho, Wo, K, Cout, *, pool, fuse_final=False,
                           out_dtype=jnp.float32):
    """DownBlock2d on wrapper-built im2col patches (no wrap garbage).

    patches: (N, Ho*Wo, K) bf16, weights: (K, Cout) bf16, bias: (1, Cout) f32.
    Used for the small-Cin first block so the image never sits lane-padded in
    VMEM and the conv is one dense MXU matmul."""
    M = Ho * Wo
    if pool:
        Hout, Wout = Ho // 2, Wo // 2
        assert Hout >= 1 and Wout >= 1, "spatial size collapsed below 1"
        rows_out = _pool_anchor_rows(Wo, Hout, Wout)
    else:
        rows_out = M
    assert not (pool and fuse_final)

    def kernel(p_ref, w_ref, b_ref, *rest):
        if fuse_final:
            wf_ref, bf_ref, o_ref, s_ref = rest
        else:
            (o_ref,) = rest
        acc = jnp.dot(p_ref[0], w_ref[...],
                      preferred_element_type=jnp.float32)        # (M, Cout)
        act = _leaky_relu(acc + b_ref[...])
        if pool:
            Lp = rows_out
            p = (act[0:Lp] + act[1:Lp + 1]
                 + act[Wo:Lp + Wo] + act[Wo + 1:Lp + Wo + 1]) * 0.25
            o_ref[0] = p.astype(o_ref.dtype)
        else:
            o_ref[0] = act.astype(o_ref.dtype)
            if fuse_final:
                # spectral-norm 1x1 head: VPU multiply + lane reduce
                s = jnp.sum(act * wf_ref[...], axis=-1, keepdims=True)
                s_ref[0] = (s + bf_ref[...]).astype(s_ref.dtype)

    in_specs = [
        pl.BlockSpec((1, M, K), lambda n: (n, 0, 0)),
        pl.BlockSpec((K, Cout), lambda n: (0, 0)),
        pl.BlockSpec((1, Cout), lambda n: (0, 0)),
    ]
    out_shape = jax.ShapeDtypeStruct((N, rows_out, Cout), out_dtype)
    out_specs = pl.BlockSpec((1, rows_out, Cout), lambda n: (n, 0, 0))
    if fuse_final:
        in_specs += [pl.BlockSpec((1, Cout), lambda n: (0, 0)),
                     pl.BlockSpec((1, 1), lambda n: (0, 0))]
        out_shape = (out_shape,
                     jax.ShapeDtypeStruct((N, rows_out, 1), jnp.float32))
        out_specs = (out_specs,
                     pl.BlockSpec((1, rows_out, 1), lambda n: (n, 0, 0)))

    call = pl.pallas_call(
        kernel, out_shape=out_shape, grid=(N,),
        in_specs=in_specs, out_specs=out_specs,
        compiler_params=pltpu.CompilerParams(
            dimension_semantics=("parallel",)),
    )
    return call, rows_out


def _make_flat_block_call(N, H, W, Cin, Cout, KH, KW, *, pool,
                          fuse_final=False, mxu_dtype=jnp.bfloat16,
                          out_dtype=jnp.float32):
    """DownBlock2d reading the flat (H*W, Cin) image.

    Tap-chunk matmuls keep MXU contraction depth >=~128 without materialising
    the full (L, KH*KW*Cin) im2col buffer.  Columns x >= Wo of the flat conv
    rows are wrap garbage; they are never read by the pool anchors and are
    dropped by the wrapper-side gather."""
    Ho, Wo = H - KH + 1, W - KW + 1
    assert Ho >= 1 and Wo >= 1, "spatial size collapsed below 1"
    if pool:
        Hout, Wout = Ho // 2, Wo // 2
        assert Hout >= 1 and Wout >= 1, "spatial size collapsed below 1"
        n_rows = 2 * Hout
        rows_out = _pool_anchor_rows(W, Hout, Wout)
    else:
        n_rows = Ho
        rows_out = (n_rows - 1) * W + Wo
    L = (n_rows - 1) * W + Wo
    assert not (pool and fuse_final)

    taps = [ky * W + kx for ky in range(KH) for kx in range(KW)]
    taps_per_mm = max(1, min(KH * KW, 128 // max(1, Cin)))
    chunks = [list(range(t, min(t + taps_per_mm, KH * KW)))
              for t in range(0, KH * KW, taps_per_mm)]

    def kernel(x_ref, w_ref, b_ref, *rest):
        if fuse_final:
            wf_ref, bf_ref, o_ref, s_ref = rest
        else:
            (o_ref,) = rest
        xb = x_ref[0].astype(mxu_dtype)           # cast the source once (bf16)
        acc = None
        for ch in chunks:
            slabs = [xb[taps[t]:taps[t] + L, :] for t in ch]
            lhs = slabs[0] if len(slabs) == 1 else jnp.concatenate(slabs,
                                                                   axis=-1)
            wrows = w_ref[ch[0] * Cin:(ch[-1] + 1) * Cin, :]
            part = jnp.dot(lhs, wrows, preferred_element_type=jnp.float32)
            acc = part if acc is None else acc + part
        act = _leaky_relu(acc + b_ref[...])
        if pool:
            Lp = rows_out
            p = (act[0:Lp] + act[1:Lp + 1]
                 + act[W:Lp + W] + act[W + 1:Lp + W + 1]) * 0.25
            o_ref[0] = p.astype(o_ref.dtype)
        else:
            o_ref[0] = act.astype(o_ref.dtype)
            if fuse_final:
                s = jnp.sum(act * wf_ref[...], axis=-1, keepdims=True)
                s_ref[0] = (s + bf_ref[...]).astype(s_ref.dtype)

    K = KH * KW * Cin
    in_specs = [
        pl.BlockSpec((1, H * W, Cin), lambda n: (n, 0, 0)),
        pl.BlockSpec((K, Cout), lambda n: (0, 0)),
        pl.BlockSpec((1, Cout), lambda n: (0, 0)),
    ]
    out_shape = jax.ShapeDtypeStruct((N, rows_out, Cout), out_dtype)
    out_specs = pl.BlockSpec((1, rows_out, Cout), lambda n: (n, 0, 0))
    if fuse_final:
        in_specs += [pl.BlockSpec((1, Cout), lambda n: (0, 0)),
                     pl.BlockSpec((1, 1), lambda n: (0, 0))]
        out_shape = (out_shape,
                     jax.ShapeDtypeStruct((N, rows_out, 1), jnp.float32))
        out_specs = (out_specs,
                     pl.BlockSpec((1, rows_out, 1), lambda n: (n, 0, 0)))

    call = pl.pallas_call(
        kernel, out_shape=out_shape, grid=(N,),
        in_specs=in_specs, out_specs=out_specs,
        compiler_params=pltpu.CompilerParams(
            dimension_semantics=("parallel",)),
    )
    return call, rows_out


# ---------------------------------------------------------------------------
# weight management (torch spectral_norm semantics, done once at init)
# ---------------------------------------------------------------------------

def _spectral_normalize(w_oihw, key, n_power_iterations=1, eps=1e-12):
    """W / sigma, sigma from power iteration on W reshaped to (Cout, -1)."""
    cout = w_oihw.shape[0]
    wm = w_oihw.reshape(cout, -1)
    u = jax.random.normal(key, (cout,), jnp.float32)
    u = u / (jnp.linalg.norm(u) + eps)
    v = None
    for _ in range(max(1, n_power_iterations)):
        v = wm.T @ u
        v = v / (jnp.linalg.norm(v) + eps)
        u = wm @ v
        u = u / (jnp.linalg.norm(u) + eps)
    sigma = jnp.dot(u, wm @ v)
    return w_oihw / sigma


# ---------------------------------------------------------------------------
# Discriminator wrapper (NCHW in / NCHW out, mirrors the PyTorch module)
# ---------------------------------------------------------------------------

class PallasDiscriminator:
    KH = KW = 4

    def __init__(self, num_channels, block_expansion=64, num_blocks=4,
                 max_features=512, is_2d=False, is_sync=False, key=None,
                 matmul_dtype=jnp.bfloat16):
        if key is None:
            key = jax.random.PRNGKey(42)
        self.is_2d = is_2d
        self.is_sync = is_sync
        self.matmul_dtype = matmul_dtype
        self.block_params = []           # (weight OIHW, bias, pool)
        for i in range(num_blocks):
            cin = num_channels if i == 0 else min(max_features,
                                                  block_expansion * 2 ** i)
            cout = min(max_features, block_expansion * 2 ** (i + 1))
            key, kw_, kb_, ku_ = jax.random.split(key, 4)
            w = 0.1 * jax.random.normal(kw_, (cout, cin, 4, 4), jnp.float32)
            b = 0.01 * jax.random.normal(kb_, (cout,), jnp.float32)
            w = _spectral_normalize(w, ku_)
            self.block_params.append((w, b, i != num_blocks - 1))
        cin_last = min(max_features, block_expansion * 2 ** num_blocks)
        key, kw_, kb_, ku_ = jax.random.split(key, 4)
        w = 0.1 * jax.random.normal(kw_, (1, cin_last, 1, 1), jnp.float32)
        b = 0.01 * jax.random.normal(kb_, (1,), jnp.float32)
        self.final_w = _spectral_normalize(w, ku_)
        self.final_b = b

    # 5D NCTHW glue (not exercised in the demo)
    @staticmethod
    def to_2d(x):
        return jnp.concatenate([x[:, :, i] for i in range(x.shape[2])], axis=0)

    @staticmethod
    def to_sync(x):
        return jnp.concatenate([x[:, :, i] for i in range(x.shape[2])], axis=1)

    def __call__(self, x):
        if self.is_2d and self.is_sync:
            raise Exception("is_2d and is_sync cannot both be True")
        if self.is_2d:
            x = self.to_2d(x)
        if self.is_sync:
            x = self.to_sync(x)

        KH, KW = self.KH, self.KW
        out = jnp.transpose(x, (0, 2, 3, 1))          # NCHW -> NHWC
        feature_maps = []
        score = None
        nblocks = len(self.block_params)
        for bi, (w, b, pool) in enumerate(self.block_params):
            N, H, W_, Cin = out.shape
            Cout = w.shape[0]
            Ho, Wo = H - KH + 1, W_ - KW + 1
            fuse = (bi == nblocks - 1)   # fuse the 1x1 score head into last block

            w2d = jnp.transpose(w, (2, 3, 1, 0)).reshape(KH * KW * Cin, Cout)
            args_tail = [w2d.astype(self.matmul_dtype), b.reshape(1, Cout)]
            if fuse:
                args_tail += [self.final_w.reshape(1, Cout).astype(jnp.float32),
                              self.final_b.reshape(1, 1).astype(jnp.float32)]

            if Cin * KH * KW <= 128:
                # small-Cin block: wrapper-side im2col (layout plumbing only),
                # one dense MXU matmul in the kernel, bf16 cast done once here.
                slabs = [out[:, ky:ky + Ho, kx:kx + Wo, :]
                         for ky in range(KH) for kx in range(KW)]
                patches = jnp.concatenate(slabs, axis=-1)
                patches = patches.reshape(N, Ho * Wo, KH * KW * Cin)
                patches = patches.astype(self.matmul_dtype)
                call, _ = _make_patch_block_call(
                    N, Ho, Wo, KH * KW * Cin, Cout, pool=pool, fuse_final=fuse)
                res = call(patches, *args_tail)
                row_stride = Wo
            else:
                call, _ = _make_flat_block_call(
                    N, H, W_, Cin, Cout, KH, KW, pool=pool, fuse_final=fuse,
                    mxu_dtype=self.matmul_dtype)
                res = call(out.reshape(N, H * W_, Cin), *args_tail)
                row_stride = W_

            raw, raw_score = (res if fuse else (res, None))

            # constant-index gather picking valid / pool-anchor rows (tiny)
            if pool:
                Hout, Wout = Ho // 2, Wo // 2
                idx = (2 * row_stride * np.arange(Hout)[:, None]
                       + 2 * np.arange(Wout)[None, :]).reshape(-1)
            else:
                Hout, Wout = Ho, Wo
                idx = (row_stride * np.arange(Ho)[:, None]
                       + np.arange(Wo)[None, :]).reshape(-1)
            idx_j = jnp.asarray(idx, jnp.int32)

            def compact(t):
                if (t.shape[1] == idx.size
                        and np.array_equal(idx, np.arange(idx.size))):
                    return t
                return jnp.take(t, idx_j, axis=1)

            out = compact(raw).reshape(N, Hout, Wout, Cout)
            feature_maps.append(out)
            if fuse:
                score = compact(raw_score).reshape(N, Hout, Wout, 1)

        feature_maps_nchw = [jnp.transpose(f, (0, 3, 1, 2))
                             for f in feature_maps]
        return feature_maps_nchw, jnp.transpose(score, (0, 3, 1, 2))


# ---------------------------------------------------------------------------
# pure-JAX (XLA) reference, NCHW
# ---------------------------------------------------------------------------

def _reference_forward(x, disc, matmul_dtype=jnp.float32):
    """matmul_dtype controls the operand rounding of the down-block convs (to
    mirror the kernel's bf16 MXU path); the final 1x1 conv and all other math
    stay in f32, like the kernel."""
    def conv(xx, w, b, dt):
        y = lax.conv_general_dilated(
            xx.astype(dt), w.astype(dt), window_strides=(1, 1),
            padding="VALID", dimension_numbers=("NCHW", "OIHW", "NCHW"),
            preferred_element_type=jnp.float32)
        return y + b.reshape(1, -1, 1, 1)

    fms = []
    out = x
    for (w, b, pool) in disc.block_params:
        out = conv(out, w, b, matmul_dtype)
        out = jnp.where(out >= 0, out, 0.2 * out)
        if pool:
            out = lax.reduce_window(out, 0.0, lax.add,
                                    (1, 1, 2, 2), (1, 1, 2, 2), "VALID") * 0.25
        fms.append(out)
    out = conv(out, disc.final_w, disc.final_b, jnp.float32)
    return fms, out


if __name__ == "__main__":
    # Small, module-consistent config: 2 down blocks, 4x4 valid convs, first
    # block pools.  Spatial: 16 -> 13 -> 6 -> 3.  Block 0 exercises the
    # pre-im2col path (Cin=3), block 1 the in-kernel tap-chunk path (Cin=16).
    num_channels, block_expansion, num_blocks, max_features = 3, 8, 2, 32
    disc = PallasDiscriminator(num_channels, block_expansion, num_blocks,
                               max_features, is_2d=False, is_sync=False,
                               key=jax.random.PRNGKey(7))

    x = jax.random.normal(jax.random.PRNGKey(0), (2, 3, 16, 16), jnp.float32)

    feature_maps, out = disc(x)
    out = jax.block_until_ready(out)
    feature_maps = [jax.block_until_ready(f) for f in feature_maps]

    # Tight check vs an XLA reference using the same bf16 matmul-operand
    # rounding (remaining differences are f32 summation-order only).
    ref_fms, ref_out = _reference_forward(x, disc, matmul_dtype=jnp.bfloat16)
    for got, ref in zip(feature_maps, ref_fms):
        np.testing.assert_allclose(np.asarray(got), np.asarray(ref),
                                   rtol=5e-3, atol=5e-3)
    np.testing.assert_allclose(np.asarray(out), np.asarray(ref_out),
                               rtol=5e-3, atol=5e-3)

    # Loose check vs the full-f32 reference (original module numerics); the
    # gap is purely the bf16 rounding of MXU operands.
    ref_fms32, ref_out32 = _reference_forward(x, disc, matmul_dtype=jnp.float32)
    for got, ref in zip(feature_maps, ref_fms32):
        np.testing.assert_allclose(np.asarray(got), np.asarray(ref),
                                   rtol=5e-2, atol=5e-2)
    np.testing.assert_allclose(np.asarray(out), np.asarray(ref_out32),
                               rtol=5e-2, atol=5e-2)

    print("KERNEL_OK")
</pallas_src>

<mosaic_0001>
module attributes {stable_mosaic.version = 11 : i64} {
  func.func @kernel(%arg0: i32, %arg1: memref<1x169x48xbf16, #tpu.memory_space<vmem>>, %arg2: memref<48x16xbf16, #tpu.memory_space<vmem>>, %arg3: memref<1x16xf32, #tpu.memory_space<vmem>>, %arg4: memref<1x141x16xf32, #tpu.memory_space<vmem>>) attributes {dimension_semantics = [#tpu.dimension_semantics<parallel>], iteration_bounds = array<i64: 2>, scalar_prefetch = 0 : i64, scratch_operands = 0 : i64, tpu.core_type = #tpu.core_type<tc>, window_params = [{transform_indices = @transform_0, window_bounds = array<i64: 1, 169, 48>}, {pipeline_mode = #tpu.pipeline_mode<synchronous>, transform_indices = @transform_1, window_bounds = array<i64: 48, 16>}, {pipeline_mode = #tpu.pipeline_mode<synchronous>, transform_indices = @transform_2, window_bounds = array<i64: 1, 16>}, {transform_indices = @transform_3, window_bounds = array<i64: 1, 141, 16>}]} {
    %c0 = arith.constant 0 : index
    %c0_0 = arith.constant 0 : index
    %c0_1 = arith.constant 0 : index
    %0 = vector.load %arg1[%c0, %c0_0, %c0_1] : memref<1x169x48xbf16, #tpu.memory_space<vmem>>, vector<1x169x48xbf16>
    %1 = vector.shape_cast %0 : vector<1x169x48xbf16> to vector<169x48xbf16>
    %c0_2 = arith.constant 0 : index
    %c0_3 = arith.constant 0 : index
    %2 = vector.load %arg2[%c0_2, %c0_3] : memref<48x16xbf16, #tpu.memory_space<vmem>>, vector<48x16xbf16>
    %cst = arith.constant dense<0.000000e+00> : vector<169x16xf32>
    %3 = tpu.matmul %1, %2, %cst {dimension_numbers = #tpu.dot_dimension_numbers<[1], [0], [0], [1], [0, 0, 1, 1], [], []>} : vector<169x48xbf16>, vector<48x16xbf16>, vector<169x16xf32> -> vector<169x16xf32>
    %c0_4 = arith.constant 0 : index
    %c0_5 = arith.constant 0 : index
    %4 = vector.load %arg3[%c0_4, %c0_5] : memref<1x16xf32, #tpu.memory_space<vmem>>, vector<1x16xf32>
    %5 = vector.broadcast %4 : vector<1x16xf32> to vector<169x16xf32>
    %6 = arith.addf %3, %5 : vector<169x16xf32>
    %cst_6 = arith.constant 0.000000e+00 : f32
    %7 = vector.broadcast %cst_6 : f32 to vector<169x16xf32>
    %8 = arith.cmpf oge, %6, %7 : vector<169x16xf32>
    %cst_7 = arith.constant 2.000000e-01 : f32
    %9 = vector.broadcast %cst_7 : f32 to vector<169x16xf32>
    %10 = arith.mulf %9, %6 : vector<169x16xf32>
    %11 = arith.select %8, %6, %10 : vector<169x16xi1>, vector<169x16xf32>
    %12 = vector.extract_strided_slice %11 {offsets = [0, 0], sizes = [141, 16], strides = [1, 1]} : vector<169x16xf32> to vector<141x16xf32>
    %13 = vector.extract_strided_slice %11 {offsets = [1, 0], sizes = [141, 16], strides = [1, 1]} : vector<169x16xf32> to vector<141x16xf32>
    %14 = arith.addf %12, %13 : vector<141x16xf32>
    %15 = vector.extract_strided_slice %11 {offsets = [13, 0], sizes = [141, 16], strides = [1, 1]} : vector<169x16xf32> to vector<141x16xf32>
    %16 = arith.addf %14, %15 : vector<141x16xf32>
    %17 = vector.extract_strided_slice %11 {offsets = [14, 0], sizes = [141, 16], strides = [1, 1]} : vector<169x16xf32> to vector<141x16xf32>
    %18 = arith.addf %16, %17 : vector<141x16xf32>
    %cst_8 = arith.constant 2.500000e-01 : f32
    %19 = vector.broadcast %cst_8 : f32 to vector<141x16xf32>
    %20 = arith.mulf %18, %19 : vector<141x16xf32>
    %c0_9 = arith.constant 0 : index
    %c0_10 = arith.constant 0 : index
    %c0_11 = arith.constant 0 : index
    %21 = vector.load %arg4[%c0_9, %c0_10, %c0_11] : memref<1x141x16xf32, #tpu.memory_space<vmem>>, vector<1x141x16xf32>
    %22 = vector.shape_cast %21 : vector<1x141x16xf32> to vector<141x16xf32>
    %23 = vector.shape_cast %20 : vector<141x16xf32> to vector<1x141x16xf32>
    tpu.vector_store %arg4[%c0_9, %c0_10, %c0_11], %23 {strides = array<i32>} : memref<1x141x16xf32, #tpu.memory_space<vmem>>, vector<1x141x16xf32>,
    return
  }
  func.func @transform_0(%arg0: i32) -> (i32, i32, i32) {
    %c0_i32 = arith.constant 0 : i32
    %c0_i32_0 = arith.constant 0 : i32
    %c0_i32_1 = arith.constant 0 : i32
    return %arg0, %c0_i32, %c0_i32_0 : i32, i32, i32
  }
  func.func @transform_1(%arg0: i32) -> (i32, i32) {
    %c0_i32 = arith.constant 0 : i32
    %c0_i32_0 = arith.constant 0 : i32
    %c0_i32_1 = arith.constant 0 : i32
    return %c0_i32, %c0_i32_0 : i32, i32
  }
  func.func @transform_2(%arg0: i32) -> (i32, i32) {
    %c0_i32 = arith.constant 0 : i32
    %c0_i32_0 = arith.constant 0 : i32
    %c0_i32_1 = arith.constant 0 : i32
    return %c0_i32, %c0_i32_0 : i32, i32
  }
  func.func @transform_3(%arg0: i32) -> (i32, i32, i32) {
    %c0_i32 = arith.constant 0 : i32
    %c0_i32_0 = arith.constant 0 : i32
    %c0_i32_1 = arith.constant 0 : i32
    return %arg0, %c0_i32, %c0_i32_0 : i32, i32, i32
  }
}

</mosaic_0001>

<llo_original>
// kernel: tpu_custom_call.1
$region0: #{tpu_custom_call.1}
  #allocation0 [shape = 'u32[]', space=smem, size = 0x4, offset = 0x4, fixed_abs, tag = 'smem constant byte address 0x4 - core index']
  #allocation1 [shape = 'u32[144,128]{1,0:T(1,128)}', space=vmem, size = 0x12000, scoped, tag = 'internal scratch']
  %s0 = inlined_call_operand.vmem [shape: bf16[2,169,48], index: 0, kind: input, shape index: {}]
  %s1 = inlined_call_operand.vmem [shape: bf16[48,16], index: 1, kind: input, shape index: {}]
  %s2 = inlined_call_operand.vmem [shape: f32[1,16], index: 2, kind: input, shape index: {}]
  %s3 = inlined_call_operand.vmem [shape: f32[2,141,16], index: 3, kind: output, shape index: {}]
  %s4 = sld [smem:[#allocation0]]
  $region45: #{tpu_custom_call.1} parent=0
    _
  %s6 = ssub.s32 1, %s4
  %s7 = scalar_select 0, %s6, %s4
  loop: start=0, step=1, limit=4
  $region2: #{tpu_custom_call.1} parent=0 // loop_pre_header
    _
  $region3: #{tpu_custom_call.1} parent=0 // loop_header
    %s9 = sphi 0, %s13
    %p10 = scmp.ge.s32.totalorder %s9, 4
    %s19 = sphi 0, %s21
    %s22 = sphi 0, %s19
    %s23 = sphi 0, %s22
    %s39 = sphi 0, %s23
    %s43 = sphi 0, %s43
    %s45 = sphi 0, %s43
    %s46 = sphi 0, %s45
    %s60 = sphi 0, %s46
    %s64 = sphi 0, %s64
    %s66 = sphi 0, %s64
    %s67 = sphi 0, %s66
    %s81 = sphi 0, %s67
    %s87 = sphi 0, %s89
    %s90 = sphi 0, %s87
    %s91 = sphi 0, %s90
    %s107 = sphi 0, %s91
  $region4: #{tpu_custom_call.1} parent=0 // loop_header_branch
    %12 = sbr.rel (%p10) target = $region8
  $region5: #{tpu_custom_call.1} parent=0 // loop_body
    %s14 = ssub.s32 %s9, 1
    %s15 = ssub.s32 %s9, 2
    %s16 = sadd.s32 %s9, 1
    %s17 = ssub.s32 %s9, %s16
    %p18 = scmp.eq.s32.totalorder %s17, 0
    %s20 = sadd.s32 %s19, 1
    %s21 = scalar_select %p18, %s19, %s20
    %p24 = pneg %p18
    %p25 = scmp.eq.s32.totalorder %s9, 1
    %p26 = por %p24, %p25
    %p27 = scmp.ne.s32.totalorder %s19, %s22
    %p28 = scmp.eq.s32.totalorder %s9, 0
    %p29 = por %p27, %p28
    %p30 = scmp.ne.s32.totalorder %s19, %s22
    %p31 = scmp.eq.s32.totalorder %s14, 1
    %p32 = por %p30, %p31
    %p33 = scmp.ne.s32.totalorder %s22, %s23
    %p34 = scmp.eq.s32.totalorder %s14, 0
    %p35 = por %p33, %p34
    %p36 = scmp.ne.s32.totalorder %s22, %s23
    %p37 = scmp.eq.s32.totalorder %s15, 1
    %p38 = por %p36, %p37
    %p40 = scmp.ne.s32.totalorder %s23, %s39
    %p41 = scmp.eq.s32.totalorder %s15, 0
    %p42 = por %p40, %p41
    %s44 = sadd.s32 %s43, 1
    %p47 = scmp.eq.s32.totalorder %s9, 1
    %p48 = scmp.ne.s32.totalorder %s43, %s45
    %p49 = scmp.eq.s32.totalorder %s9, 0
    %p50 = por %p48, %p49
    %p51 = scmp.ne.s32.totalorder %s43, %s45
    %p52 = scmp.eq.s32.totalorder %s14, 1
    %p53 = por %p51, %p52
    %p54 = scmp.ne.s32.totalorder %s45, %s46
    %p55 = scmp.eq.s32.totalorder %s14, 0
    %p56 = por %p54, %p55
    %p57 = scmp.ne.s32.totalorder %s45, %s46
    %p58 = scmp.eq.s32.totalorder %s15, 1
    %p59 = por %p57, %p58
    %p61 = scmp.ne.s32.totalorder %s46, %s60
    %p62 = scmp.eq.s32.totalorder %s15, 0
    %p63 = por %p61, %p62
    %s65 = sadd.s32 %s64, 1
    %p68 = scmp.eq.s32.totalorder %s9, 1
    %p69 = scmp.ne.s32.totalorder %s64, %s66
    %p70 = scmp.eq.s32.totalorder %s9, 0
    %p71 = por %p69, %p70
    %p72 = scmp.ne.s32.totalorder %s64, %s66
    %p73 = scmp.eq.s32.totalorder %s14, 1
    %p74 = por %p72, %p73
    %p75 = scmp.ne.s32.totalorder %s66, %s67
    %p76 = scmp.eq.s32.totalorder %s14, 0
    %p77 = por %p75, %p76
    %p78 = scmp.ne.s32.totalorder %s66, %s67
    %p79 = scmp.eq.s32.totalorder %s15, 1
    %p80 = por %p78, %p79
    %p82 = scmp.ne.s32.totalorder %s67, %s81
    %p83 = scmp.eq.s32.totalorder %s15, 0
    %p84 = por %p82, %p83
    %s85 = ssub.s32 %s9, %s16
    %p86 = scmp.eq.s32.totalorder %s85, 0
    %s88 = sadd.s32 %s87, 1
    %s89 = scalar_select %p86, %s87, %s88
    %p92 = pneg %p86
    %p93 = scmp.eq.s32.totalorder %s9, 1
    %p94 = por %p92, %p93
    %p95 = scmp.ne.s32.totalorder %s87, %s90
    %p96 = scmp.eq.s32.totalorder %s9, 0
    %p97 = por %p95, %p96
    %p98 = scmp.ne.s32.totalorder %s87, %s90
    %p99 = scmp.eq.s32.totalorder %s14, 1
    %p100 = por %p98, %p99
    %p101 = scmp.ne.s32.totalorder %s90, %s91
    %p102 = scmp.eq.s32.totalorder %s14, 0
    %p103 = por %p101, %p102
    %p104 = scmp.ne.s32.totalorder %s90, %s91
    %p105 = scmp.eq.s32.totalorder %s15, 1
    %p106 = por %p104, %p105
    %p108 = scmp.ne.s32.totalorder %s91, %s107
    %p109 = scmp.eq.s32.totalorder %s15, 0
    %p110 = por %p108, %p109
    %p111 = scmp.le.s32.totalorder 1, %s9
    %p112 = scmp.lt.s32.totalorder %s9, 3
    %p113 = pnand %p111, %p112
    %p114 = pneg %p113
    // Predicated region
    $region9: #{tpu_custom_call.1} parent=5 // pred_check
      _
    $region10: #{tpu_custom_call.1} parent=5 // pred_check_branch
      %116 = sbr.rel (%p113) target = $region12
    $region11: #{tpu_custom_call.1} parent=5 // pred_region
      %s117 = ssub.s32 %s9, 1
      // Predicated region
      $region13: #{tpu_custom_call.1} parent=11 // pred_check
        %p118 = pneg %p56
      $region14: #{tpu_custom_call.1} parent=11 // pred_check_branch
        %120 = sbr.rel (%p118) target = $region16
      $region15: #{tpu_custom_call.1} parent=11 // pred_region
        _
      $region16: #{tpu_custom_call.1} parent=11 // pred_fallthru
        _
      // Predicated region
      $region17: #{tpu_custom_call.1} parent=11 // pred_check
        %p121 = pneg %p77
      $region18: #{tpu_custom_call.1} parent=11 // pred_check_branch
        %123 = sbr.rel (%p121) target = $region20
      $region19: #{tpu_custom_call.1} parent=11 // pred_region
        _
      $region20: #{tpu_custom_call.1} parent=11 // pred_fallthru
        _
    $region12: #{tpu_custom_call.1} parent=5 // pred_fallthru
      _
    %p124 = scmp.lt.s32.totalorder %s9, 2
    // Predicated region
    $region21: #{tpu_custom_call.1} parent=5 // pred_check
      %p125 = pneg %p124
    $region22: #{tpu_custom_call.1} parent=5 // pred_check_branch
      %127 = sbr.rel (%p125) target = $region24
    $region23: #{tpu_custom_call.1} parent=5 // pred_region
      // Predicated region
      $region25: #{tpu_custom_call.1} parent=23 // pred_check
        %p128 = pneg %p29
      $region26: #{tpu_custom_call.1} parent=23 // pred_check_branch
        %130 = sbr.rel (%p128) target = $region28
      $region27: #{tpu_custom_call.1} parent=23 // pred_region
        %p131 = scmp.lt.s32.totalorder %s9, 1
        %s132 = scalar_select %p131, %s9, 1
        %s133 = smul.addr %s132, 22
        %s134 = smul.addr %s133, 4
        %s135 = scalar_lea.vmem %s0, %s134
      $region28: #{tpu_custom_call.1} parent=23 // pred_fallthru
        _
    $region24: #{tpu_custom_call.1} parent=5 // pred_fallthru
      _
    %p136 = scmp.le.s32.totalorder 1, %s9
    %p137 = scmp.lt.s32.totalorder %s9, 3
    %p138 = pnand %p136, %p137
    %p139 = pneg %p138
    // Predicated region
    $region29: #{tpu_custom_call.1} parent=5 // pred_check
      _
    $region30: #{tpu_custom_call.1} parent=5 // pred_check_branch
      %141 = sbr.rel (%p138) target = $region32
    $region31: #{tpu_custom_call.1} parent=5 // pred_region
      %s142 = ssub.s32 %s9, 1
      %p143 = scmp.lt.s32.totalorder %s14, 1
      %s144 = scalar_select %p143, %s14, 1
      %s145 = smul.addr %s144, 22
      %s146 = smul.addr %s145, 4
      %s147 = scalar_lea.vmem %s0, %s146
      %p148 = pneg %p35
      %p149 = pneg %p32
      %p150 = pneg %p56
      %p151 = pneg %p53
      %p152 = pneg %p77
      %p153 = pneg %p74
      %p154 = pneg %p103
      %p155 = pneg %p100
      %p156 = scmp.lt.s32.totalorder %s14, 1
      %s157 = scalar_select %p156, %s14, 1
      %s158 = smul.addr %s157, 18
      %s159 = smul.addr %s158, 8
      %s160 = scalar_lea.vmem %s3, %s159
      %p161 = scmp.lt.s32.totalorder %s14, 1
      %s162 = scalar_select %p161, %s14, 1
      %s163 = smul.addr %s162, 22
      %s164 = smul.addr %s163, 4
      %s165 = scalar_lea.vmem %s0, %s164
      %p166 = scmp.lt.s32.totalorder %s14, 1
      %s167 = scalar_select %p166, %s14, 1
      %s168 = smul.addr %s167, 18
      %s169 = smul.addr %s168, 8
      %s170 = scalar_lea.vmem %s3, %s169
      %v172 = vld [vmem:[%s165] sm:$0xf]
      %v173 = vld [vmem:[%s165 + $0x4] sm:$0xf]
      %v174 = vld [vmem:[%s165 + $0x8] sm:$0xf]
      %v175 = vld [vmem:[%s165 + $0xc] sm:$0xf]
      %v176 = vld [vmem:[%s165 + $0x10] sm:$0xf]
      %v177 = vld [vmem:[%s165 + $0x14] sm:$0xf]
      %v178 = vld [vmem:[%s165 + $0x18] sm:$0xf]
      %v179 = vld [vmem:[%s165 + $0x1c] sm:$0xf]
      %v180 = vld [vmem:[%s165 + $0x20] sm:$0xf]
      %v181 = vld [vmem:[%s165 + $0x24] sm:$0xf]
      %v182 = vld [vmem:[%s165 + $0x28] sm:$0xf]
      %v183 = vld [vmem:[%s165 + $0x2c] sm:$0xf]
      %v184 = vld [vmem:[%s165 + $0x30] sm:$0xf]
      %v185 = vld [vmem:[%s165 + $0x34] sm:$0xf]
      %v186 = vld [vmem:[%s165 + $0x38] sm:$0xf]
      %v187 = vld [vmem:[%s165 + $0x3c] sm:$0xf]
      %v188 = vld [vmem:[%s165 + $0x40] sm:$0xf]
      %v189 = vld [vmem:[%s165 + $0x44] sm:$0xf]
      %v190 = vld [vmem:[%s165 + $0x48] sm:$0xf]
      %v191 = vld [vmem:[%s165 + $0x4c] sm:$0xf]
      %v192 = vld [vmem:[%s165 + $0x50] sm:$0xf]
      %v193 = vld [vmem:[%s165 + $0x54] sm:$0x1]
      %v194 = vld [vmem:[%s1] sm:$0xf]
      %v195 = vld [vmem:[%s1 + $0x4] sm:$0xf]
      %v196 = vld [vmem:[%s1 + $0x8] sm:$0xf]
      %v197 = vld [vmem:[%s1 + $0xc] sm:$0xf]
      %v198 = vld [vmem:[%s1 + $0x10] sm:$0xf]
      %v199 = vld [vmem:[%s1 + $0x14] sm:$0xf]
      %v200 = vld [vmem:[%s2] sm:$0x1]
      %v202 = vlaneseq
      %v203 = vshrl.u32 %v202, 7
      %v204 = vsub.s32 0, %v203
      %v205 = vrot.slane %v200, %v204
      %v229 = vunpack.c.l.b16 %v172
      %v230 = vunpack.c.l.b16 %v173
      %v231 = vunpack.c.l.b16 %v174
      %v232 = vunpack.c.l.b16 %v175
      %v233 = vunpack.c.l.b16 %v176
      %v234 = vunpack.c.l.b16 %v177
      %v235 = vunpack.c.l.b16 %v178
      %v236 = vunpack.c.l.b16 %v179
      %v237 = vunpack.c.l.b16 %v180
      %v238 = vunpack.c.l.b16 %v181
      %v239 = vunpack.c.l.b16 %v182
      %v240 = vunpack.c.l.b16 %v183
      %v241 = vunpack.c.l.b16 %v184
      %v242 = vunpack.c.l.b16 %v185
      %v243 = vunpack.c.l.b16 %v186
      %v244 = vunpack.c.l.b16 %v187
      %v245 = vunpack.c.l.b16 %v188
      %v246 = vunpack.c.l.b16 %v189
      %v247 = vunpack.c.l.b16 %v190
      %v248 = vunpack.c.l.b16 %v191
      %v249 = vunpack.c.l.b16 %v192
      %v250 = vunpack.c.l.b16 %v193
      %v251 = vpack.c.b16 %v230, %v229
      %v252 = vpack.c.b16 %v232, %v231
      %v253 = vpack.c.b16 %v234, %v233
      %v254 = vpack.c.b16 %v236, %v235
      %v255 = vpack.c.b16 %v238, %v237
      %v256 = vpack.c.b16 %v240, %v239
      %v257 = vpack.c.b16 %v242, %v241
      %v258 = vpack.c.b16 %v244, %v243
      %v259 = vpack.c.b16 %v246, %v245
      %v260 = vpack.c.b16 %v248, %v247
      %v261 = vpack.c.b16 %v250, %v249
      %v268 = vunpack.c.l.b16 %v194
      %v269 = vunpack.c.l.b16 %v195
      %v270 = vunpack.c.l.b16 %v196
      %v271 = vunpack.c.l.b16 %v197
      %v272 = vunpack.c.l.b16 %v198
      %v273 = vunpack.c.l.b16 %v199
      %v274 = vpack.c.b16 %v269, %v268
      %v275 = vpack.c.b16 %v271, %v270
      %v276 = vpack.c.b16 %v273, %v272
      %vm280 = vcmask 392192
      %v282 = vsel %vm280, %v251, 0
      %v285 = vsel %vm280, %v252, 0
      %v288 = vsel %vm280, %v253, 0
      %v291 = vsel %vm280, %v254, 0
      %v294 = vsel %vm280, %v255, 0
      %v297 = vsel %vm280, %v256, 0
      %v300 = vsel %vm280, %v257, 0
      %v303 = vsel %vm280, %v258, 0
      %v306 = vsel %vm280, %v259, 0
      %v309 = vsel %vm280, %v260, 0
      %v312 = vsel %vm280, %v261, 0
      %314 = vmatprep.subr.bf16.mxu0 0
      %315 = vmatpush1.bf16.msra.mxu0 %v274
      %316 = vmatprep.subr.bf16.mxu0 0
      %317 = vmatpush1.bf16.msra.mxu0 %v275
      %318 = vmatprep.subr.bf16.mxu0 0
      %319 = vmatpush1.bf16.msra.mxu0 %v276
      %320 = vmatprep.subr.bf16.mxu0 0
      %321 = vmatpush1.bf16.msra.mxu0 0
      %322 = vmatprep.subr.bf16.mxu0 0
      %323 = vmatpush1.bf16.msra.mxu0 0
      %324 = vmatprep.subr.bf16.mxu0 0
      %325 = vmatpush1.bf16.msra.mxu0 0
      %326 = vmatprep.subr.bf16.mxu0 0
      %327 = vmatpush1.bf16.msra.mxu0 0
      %328 = vmatprep.subr.bf16.mxu0 0
      %329 = vmatpush1.bf16.msra.mxu0 0
      %330 = vmatprep.subr.bf16.mxu0 0
      %331 = vmatpush1.bf16.msra.mxu0 0
      %332 = vmatprep.subr.bf16.mxu0 0
      %333 = vmatpush1.bf16.msra.mxu0 0
      %334 = vmatprep.subr.bf16.mxu0 0
      %335 = vmatpush1.bf16.msra.mxu0 0
      %336 = vmatprep.subr.bf16.mxu0 0
      %337 = vmatpush1.bf16.msra.mxu0 0
      %338 = vmatprep.subr.bf16.mxu0 0
      %339 = vmatpush1.bf16.msra.mxu0 0
      %340 = vmatprep.subr.bf16.mxu0 0
      %341 = vmatpush1.bf16.msra.mxu0 0
      %342 = vmatprep.subr.bf16.mxu0 0
      %343 = vmatpush1.bf16.msra.mxu0 0
      %344 = vmatprep.subr.bf16.mxu0 0
      %345 = vmatpush1.bf16.msra.mxu0 0
      %346 = vmatprep.mubr.bf16.mxu0 0
      %347 = vmatmul.mubr.bf16.gmra.mrb[0].mxu0 %v282
      %v348 = vpop.f32.mrb[0].mxu0
      %v349 = vadd.f32 %v205, %v348
      %v350 = vpop.f32.mrb[0].mxu0
      %v351 = vpop.f32.mrb[0].mxu0
      %v352 = vadd.f32 %v205, %v351
      %v353 = vpop.f32.mrb[0].mxu0
      %354 = vmatprep.mubr.bf16.mxu0 0
      %355 = vmatmul.mubr.bf16.gmra.mrb[0].mxu0 %v285
      %v356 = vpop.f32.mrb[0].mxu0
      %v357 = vadd.f32 %v205, %v356
      %v358 = vpop.f32.mrb[0].mxu0
      %v359 = vpop.f32.mrb[0].mxu0
      %v360 = vadd.f32 %v205, %v359
      %v361 = vpop.f32.mrb[0].mxu0
      %362 = vmatprep.mubr.bf16.mxu0 0
      %363 = vmatmul.mubr.bf16.gmra.mrb[0].mxu0 %v288
      %v364 = vpop.f32.mrb[0].mxu0
      %v365 = vadd.f32 %v205, %v364
      %v366 = vpop.f32.mrb[0].mxu0
      %v367 = vpop.f32.mrb[0].mxu0
      %v368 = vadd.f32 %v205, %v367
      %v369 = vpop.f32.mrb[0].mxu0
      %370 = vmatprep.mubr.bf16.mxu0 0
      %371 = vmatmul.mubr.bf16.gmra.mrb[0].mxu0 %v291
      %v372 = vpop.f32.mrb[0].mxu0
      %v373 = vadd.f32 %v205, %v372
      %v374 = vpop.f32.mrb[0].mxu0
      %v375 = vpop.f32.mrb[0].mxu0
      %v376 = vadd.f32 %v205, %v375
      %v377 = vpop.f32.mrb[0].mxu0
      %378 = vmatprep.mubr.bf16.mxu0 0
      %379 = vmatmul.mubr.bf16.gmra.mrb[0].mxu0 %v294
      %v380 = vpop.f32.mrb[0].mxu0
      %v381 = vadd.f32 %v205, %v380
      %v382 = vpop.f32.mrb[0].mxu0
      %v383 = vpop.f32.mrb[0].mxu0
      %v384 = vadd.f32 %v205, %v383
      %v385 = vpop.f32.mrb[0].mxu0
      %386 = vmatprep.mubr.bf16.mxu0 0
      %387 = vmatmul.mubr.bf16.gmra.mrb[0].mxu0 %v297
      %v388 = vpop.f32.mrb[0].mxu0
      %v389 = vadd.f32 %v205, %v388
      %v390 = vpop.f32.mrb[0].mxu0
      %v391 = vpop.f32.mrb[0].mxu0
      %v392 = vadd.f32 %v205, %v391
      %v393 = vpop.f32.mrb[0].mxu0
      %394 = vmatprep.mubr.bf16.mxu0 0
      %395 = vmatmul.mubr.bf16.gmra.mrb[0].mxu0 %v300
      %v396 = vpop.f32.mrb[0].mxu0
      %v397 = vadd.f32 %v205, %v396
      %v398 = vpop.f32.mrb[0].mxu0
      %v399 = vpop.f32.mrb[0].mxu0
      %v400 = vadd.f32 %v205, %v399
      %v401 = vpop.f32.mrb[0].mxu0
      %402 = vmatprep.mubr.bf16.mxu0 0
      %403 = vmatmul.mubr.bf16.gmra.mrb[0].mxu0 %v303
      %v404 = vpop.f32.mrb[0].mxu0
      %v405 = vadd.f32 %v205, %v404
      %v406 = vpop.f32.mrb[0].mxu0
      %v407 = vpop.f32.mrb[0].mxu0
      %v408 = vadd.f32 %v205, %v407
      %v409 = vpop.f32.mrb[0].mxu0
      %410 = vmatprep.mubr.bf16.mxu0 0
      %411 = vmatmul.mubr.bf16.gmra.mrb[0].mxu0 %v306
      %v412 = vpop.f32.mrb[0].mxu0
      %v413 = vadd.f32 %v205, %v412
      %v414 = vpop.f32.mrb[0].mxu0
      %v415 = vpop.f32.mrb[0].mxu0
      %v416 = vadd.f32 %v205, %v415
      %v417 = vpop.f32.mrb[0].mxu0
      %418 = vmatprep.mubr.bf16.mxu0 0
      %419 = vmatmul.mubr.bf16.gmra.mrb[0].mxu0 %v309
      %v420 = vpop.f32.mrb[0].mxu0
      %v421 = vadd.f32 %v205, %v420
      %v422 = vpop.f32.mrb[0].mxu0
      %v423 = vpop.f32.mrb[0].mxu0
      %v424 = vadd.f32 %v205, %v423
      %v425 = vpop.f32.mrb[0].mxu0
      %426 = vmatprep.mubr.bf16.mxu0 0
      %427 = vmatmul.mubr.bf16.gmra.mrb[0].mxu0 %v312
      %v428 = vpop.f32.mrb[0].mxu0
      %v429 = vpop.f32.mrb[0].mxu0
      %v430 = vpop.f32.mrb[0].mxu0
      %v431 = vpop.f32.mrb[0].mxu0
      %432 = vdwg.mxu0
      %vm433 = vcmp.ge.f32.partialorder %v349, 0.0
      %vm434 = vcmp.ge.f32.partialorder %v352, 0.0
      %vm435 = vcmp.ge.f32.partialorder %v357, 0.0
      %vm436 = vcmp.ge.f32.partialorder %v360, 0.0
      %vm437 = vcmp.ge.f32.partialorder %v365, 0.0
      %vm438 = vcmp.ge.f32.partialorder %v368, 0.0
      %vm439 = vcmp.ge.f32.partialorder %v373, 0.0
      %vm440 = vcmp.ge.f32.partialorder %v376, 0.0
      %vm441 = vcmp.ge.f32.partialorder %v381, 0.0
      %vm442 = vcmp.ge.f32.partialorder %v384, 0.0
      %vm443 = vcmp.ge.f32.partialorder %v389, 0.0
      %vm444 = vcmp.ge.f32.partialorder %v392, 0.0
      %vm445 = vcmp.ge.f32.partialorder %v397, 0.0
      %vm446 = vcmp.ge.f32.partialorder %v400, 0.0
      %vm447 = vcmp.ge.f32.partialorder %v405, 0.0
      %vm448 = vcmp.ge.f32.partialorder %v408, 0.0
      %vm449 = vcmp.ge.f32.partialorder %v413, 0.0
      %vm450 = vcmp.ge.f32.partialorder %v416, 0.0
      %vm451 = vcmp.ge.f32.partialorder %v421, 0.0
      %vm452 = vcmp.ge.f32.partialorder %v424, 0.0
      %v453 = vmul.f32 %v349, 0.2
      %v454 = vmul.f32 %v352, 0.2
      %v455 = vmul.f32 %v357, 0.2
      %v456 = vmul.f32 %v360, 0.2
      %v457 = vmul.f32 %v365, 0.2
      %v458 = vmul.f32 %v368, 0.2
      %v459 = vmul.f32 %v373, 0.2
      %v460 = vmul.f32 %v376, 0.2
      %v461 = vmul.f32 %v381, 0.2
      %v462 = vmul.f32 %v384, 0.2
      %v463 = vmul.f32 %v389, 0.2
      %v464 = vmul.f32 %v392, 0.2
      %v465 = vmul.f32 %v397, 0.2
      %v466 = vmul.f32 %v400, 0.2
      %v467 = vmul.f32 %v405, 0.2
      %v468 = vmul.f32 %v408, 0.2
      %v469 = vmul.f32 %v413, 0.2
      %v470 = vmul.f32 %v416, 0.2
      %v471 = vmul.f32 %v421, 0.2
      %v472 = vmul.f32 %v424, 0.2
      %v473 = vsel %vm433, %v349, %v453
      %v474 = vsel %vm434, %v352, %v454
      %v475 = vsel %vm435, %v357, %v455
      %v476 = vsel %vm436, %v360, %v456
      %v477 = vsel %vm437, %v365, %v457
      %v478 = vsel %vm438, %v368, %v458
      %v479 = vsel %vm439, %v373, %v459
      %v480 = vsel %vm440, %v376, %v460
      %v481 = vsel %vm441, %v381, %v461
      %v482 = vsel %vm442, %v384, %v462
      %v483 = vsel %vm443, %v389, %v463
      %v484 = vsel %vm444, %v392, %v464
      %v485 = vsel %vm445, %v397, %v465
      %v486 = vsel %vm446, %v400, %v466
      %v487 = vsel %vm447, %v405, %v467
      %v488 = vsel %vm448, %v408, %v468
      %v489 = vsel %vm449, %v413, %v469
      %v490 = vsel %vm450, %v416, %v470
      %v491 = vsel %vm451, %v421, %v471
      %v492 = vsel %vm452, %v424, %v472
      %vm511 = vcmask 1046528
      %v512 = vrot.slane %v473, 1
      %v513 = vrot.slane %v474, 1
      %v514 = vsel %vm511, %v512, %v513
      %v515 = vrot.slane %v475, 1
      %v516 = vsel %vm511, %v513, %v515
      %v517 = vrot.slane %v476, 1
      %v518 = vsel %vm511, %v515, %v517
      %v519 = vrot.slane %v477, 1
      %v520 = vsel %vm511, %v517, %v519
      %v521 = vrot.slane %v478, 1
      %v522 = vsel %vm511, %v519, %v521
      %v523 = vrot.slane %v479, 1
      %v524 = vsel %vm511, %v521, %v523
      %v525 = vrot.slane %v480, 1
      %v526 = vsel %vm511, %v523, %v525
      %v527 = vrot.slane %v481, 1
      %v528 = vsel %vm511, %v525, %v527
      %v529 = vrot.slane %v482, 1
      %v530 = vsel %vm511, %v527, %v529
      %v531 = vrot.slane %v483, 1
      %v532 = vsel %vm511, %v529, %v531
      %v533 = vrot.slane %v484, 1
      %v534 = vsel %vm511, %v531, %v533
      %v535 = vrot.slane %v485, 1
      %v536 = vsel %vm511, %v533, %v535
      %v537 = vrot.slane %v486, 1
      %v538 = vsel %vm511, %v535, %v537
      %v539 = vrot.slane %v487, 1
      %v540 = vsel %vm511, %v537, %v539
      %v541 = vrot.slane %v488, 1
      %v542 = vsel %vm511, %v539, %v541
      %v543 = vrot.slane %v489, 1
      %v544 = vsel %vm511, %v541, %v543
      %v545 = vrot.slane %v490, 1
      %v546 = vsel %vm511, %v543, %v545
      %v565 = vadd.f32 %v473, %v514
      %v566 = vadd.f32 %v474, %v516
      %v567 = vadd.f32 %v475, %v518
      %v568 = vadd.f32 %v476, %v520
      %v569 = vadd.f32 %v477, %v522
      %v570 = vadd.f32 %v478, %v524
      %v571 = vadd.f32 %v479, %v526
      %v572 = vadd.f32 %v480, %v528
      %v573 = vadd.f32 %v481, %v530
      %v574 = vadd.f32 %v482, %v532
      %v575 = vadd.f32 %v483, %v534
      %v576 = vadd.f32 %v484, %v536
      %v577 = vadd.f32 %v485, %v538
      %v578 = vadd.f32 %v486, %v540
      %v579 = vadd.f32 %v487, %v542
      %v580 = vadd.f32 %v488, %v544
      %v581 = vadd.f32 %v489, %v546
      %v582 = vadd.f32 %v490, %v545
      %vm585 = vcmask 1042432
      %v586 = vrot.slane %v474, 5
      %v587 = vrot.slane %v475, 5
      %v588 = vsel %vm585, %v586, %v587
      %v589 = vrot.slane %v476, 5
      %v590 = vsel %vm585, %v587, %v589
      %v591 = vrot.slane %v477, 5
      %v592 = vsel %vm585, %v589, %v591
      %v593 = vrot.slane %v478, 5
      %v594 = vsel %vm585, %v591, %v593
      %v595 = vrot.slane %v479, 5
      %v596 = vsel %vm585, %v593, %v595
      %v597 = vrot.slane %v480, 5
      %v598 = vsel %vm585, %v595, %v597
      %v599 = vrot.slane %v481, 5
      %v600 = vsel %vm585, %v597, %v599
      %v601 = vrot.slane %v482, 5
      %v602 = vsel %vm585, %v599, %v601
      %v603 = vrot.slane %v483, 5
      %v604 = vsel %vm585, %v601, %v603
      %v605 = vrot.slane %v484, 5
      %v606 = vsel %vm585, %v603, %v605
      %v607 = vrot.slane %v485, 5
      %v608 = vsel %vm585, %v605, %v607
      %v609 = vrot.slane %v486, 5
      %v610 = vsel %vm585, %v607, %v609
      %v611 = vrot.slane %v487, 5
      %v612 = vsel %vm585, %v609, %v611
      %v613 = vrot.slane %v488, 5
      %v614 = vsel %vm585, %v611, %v613
      %v615 = vrot.slane %v489, 5
      %v616 = vsel %vm585, %v613, %v615
      %v617 = vrot.slane %v490, 5
      %v618 = vsel %vm585, %v615, %v617
      %v619 = vrot.slane %v491, 5
      %v620 = vsel %vm585, %v617, %v619
      %v621 = vrot.slane %v492, 5
      %v622 = vsel %vm585, %v619, %v621
      %v641 = vadd.f32 %v565, %v588
      %v642 = vadd.f32 %v566, %v590
      %v643 = vadd.f32 %v567, %v592
      %v644 = vadd.f32 %v568, %v594
      %v645 = vadd.f32 %v569, %v596
      %v646 = vadd.f32 %v570, %v598
      %v647 = vadd.f32 %v571, %v600
      %v648 = vadd.f32 %v572, %v602
      %v649 = vadd.f32 %v573, %v604
      %v650 = vadd.f32 %v574, %v606
      %v651 = vadd.f32 %v575, %v608
      %v652 = vadd.f32 %v576, %v610
      %v653 = vadd.f32 %v577, %v612
      %v654 = vadd.f32 %v578, %v614
      %v655 = vadd.f32 %v579, %v616
      %v656 = vadd.f32 %v580, %v618
      %v657 = vadd.f32 %v581, %v620
      %v658 = vadd.f32 %v582, %v622
      %vm659 = vcmask 1041408
      %v660 = vrot.slane %v474, 6
      %v661 = vrot.slane %v475, 6
      %v662 = vsel %vm659, %v660, %v661
      %v663 = vrot.slane %v476, 6
      %v664 = vsel %vm659, %v661, %v663
      %v665 = vrot.slane %v477, 6
      %v666 = vsel %vm659, %v663, %v665
      %v667 = vrot.slane %v478, 6
      %v668 = vsel %vm659, %v665, %v667
      %v669 = vrot.slane %v479, 6
      %v670 = vsel %vm659, %v667, %v669
      %v671 = vrot.slane %v480, 6
      %v672 = vsel %vm659, %v669, %v671
      %v673 = vrot.slane %v481, 6
      %v674 = vsel %vm659, %v671, %v673
      %v675 = vrot.slane %v482, 6
      %v676 = vsel %vm659, %v673, %v675
      %v677 = vrot.slane %v483, 6
      %v678 = vsel %vm659, %v675, %v677
      %v679 = vrot.slane %v484, 6
      %v680 = vsel %vm659, %v677, %v679
      %v681 = vrot.slane %v485, 6
      %v682 = vsel %vm659, %v679, %v681
      %v683 = vrot.slane %v486, 6
      %v684 = vsel %vm659, %v681, %v683
      %v685 = vrot.slane %v487, 6
      %v686 = vsel %vm659, %v683, %v685
      %v687 = vrot.slane %v488, 6
      %v688 = vsel %vm659, %v685, %v687
      %v689 = vrot.slane %v489, 6
      %v690 = vsel %vm659, %v687, %v689
      %v691 = vrot.slane %v490, 6
      %v692 = vsel %vm659, %v689, %v691
      %v693 = vrot.slane %v491, 6
      %v694 = vsel %vm659, %v691, %v693
      %v695 = vrot.slane %v492, 6
      %v696 = vsel %vm659, %v693, %v695
      %v715 = vadd.f32 %v641, %v662
      %v716 = vadd.f32 %v642, %v664
      %v717 = vadd.f32 %v643, %v666
      %v718 = vadd.f32 %v644, %v668
      %v719 = vadd.f32 %v645, %v670
      %v720 = vadd.f32 %v646, %v672
      %v721 = vadd.f32 %v647, %v674
      %v722 = vadd.f32 %v648, %v676
      %v723 = vadd.f32 %v649, %v678
      %v724 = vadd.f32 %v650, %v680
      %v725 = vadd.f32 %v651, %v682
      %v726 = vadd.f32 %v652, %v684
      %v727 = vadd.f32 %v653, %v686
      %v728 = vadd.f32 %v654, %v688
      %v729 = vadd.f32 %v655, %v690
      %v730 = vadd.f32 %v656, %v692
      %v731 = vadd.f32 %v657, %v694
      %v732 = vadd.f32 %v658, %v696
      %v733 = vmul.f32 %v715, 0.25
      %v734 = vmul.f32 %v716, 0.25
      %v735 = vmul.f32 %v717, 0.25
      %v736 = vmul.f32 %v718, 0.25
      %v737 = vmul.f32 %v719, 0.25
      %v738 = vmul.f32 %v720, 0.25
      %v739 = vmul.f32 %v721, 0.25
      %v740 = vmul.f32 %v722, 0.25
      %v741 = vmul.f32 %v723, 0.25
      %v742 = vmul.f32 %v724, 0.25
      %v743 = vmul.f32 %v725, 0.25
      %v744 = vmul.f32 %v726, 0.25
      %v745 = vmul.f32 %v727, 0.25
      %v746 = vmul.f32 %v728, 0.25
      %v747 = vmul.f32 %v729, 0.25
      %v748 = vmul.f32 %v730, 0.25
      %v749 = vmul.f32 %v731, 0.25
      %v750 = vmul.f32 %v732, 0.25
      %vm751 = vcmask 130048
      %752 = vst.msk [vmem:[%s170] sm:$0xff] %vm751, %v733
      %753 = vst.msk [vmem:[%s170 + $0x8] sm:$0xff] %vm751, %v734
      %754 = vst.msk [vmem:[%s170 + $0x10] sm:$0xff] %vm751, %v735
      %755 = vst.msk [vmem:[%s170 + $0x18] sm:$0xff] %vm751, %v736
      %756 = vst.msk [vmem:[%s170 + $0x20] sm:$0xff] %vm751, %v737
      %757 = vst.msk [vmem:[%s170 + $0x28] sm:$0xff] %vm751, %v738
      %758 = vst.msk [vmem:[%s170 + $0x30] sm:$0xff] %vm751, %v739
      %759 = vst.msk [vmem:[%s170 + $0x38] sm:$0xff] %vm751, %v740
      %760 = vst.msk [vmem:[%s170 + $0x40] sm:$0xff] %vm751, %v741
      %761 = vst.msk [vmem:[%s170 + $0x48] sm:$0xff] %vm751, %v742
      %762 = vst.msk [vmem:[%s170 + $0x50] sm:$0xff] %vm751, %v743
      %763 = vst.msk [vmem:[%s170 + $0x58] sm:$0xff] %vm751, %v744
      %764 = vst.msk [vmem:[%s170 + $0x60] sm:$0xff] %vm751, %v745
      %765 = vst.msk [vmem:[%s170 + $0x68] sm:$0xff] %vm751, %v746
      %766 = vst.msk [vmem:[%s170 + $0x70] sm:$0xff] %vm751, %v747
      %767 = vst.msk [vmem:[%s170 + $0x78] sm:$0xff] %vm751, %v748
      %768 = vst.msk [vmem:[%s170 + $0x80] sm:$0xff] %vm751, %v749
      %vm769 = vcmask 126976
      %770 = vst.msk [vmem:[%s170 + $0x88] sm:$0x1f] %vm769, %v750
      %p771 = scmp.lt.s32.totalorder %s14, 1
      %s772 = scalar_select %p771, %s14, 1
      %s773 = smul.addr %s772, 18
      %s774 = smul.addr %s773, 8
      %s775 = scalar_lea.vmem %s3, %s774
      // Predicated region
      $region33: #{tpu_custom_call.1} parent=31 // pred_check
        %p776 = pneg %p100
      $region34: #{tpu_custom_call.1} parent=31 // pred_check_branch
        %778 = sbr.rel (%p776) target = $region36
      $region35: #{tpu_custom_call.1} parent=31 // pred_region
        _
      $region36: #{tpu_custom_call.1} parent=31 // pred_fallthru
        _
    $region32: #{tpu_custom_call.1} parent=5 // pred_fallthru
      _
    %p779 = scmp.le.s32.totalorder 2, %s9
    // Predicated region
    $region37: #{tpu_custom_call.1} parent=5 // pred_check
      %p780 = pneg %p779
    $region38: #{tpu_custom_call.1} parent=5 // pred_check_branch
      %782 = sbr.rel (%p780) target = $region40
    $region39: #{tpu_custom_call.1} parent=5 // pred_region
      %s783 = ssub.s32 %s9, 2
      // Predicated region
      $region41: #{tpu_custom_call.1} parent=39 // pred_check
        %p784 = pneg %p106
      $region42: #{tpu_custom_call.1} parent=39 // pred_check_branch
        %786 = sbr.rel (%p784) target = $region44
      $region43: #{tpu_custom_call.1} parent=39 // pred_region
        %p787 = scmp.lt.s32.totalorder %s15, 1
        %s788 = scalar_select %p787, %s15, 1
        %s789 = smul.addr %s788, 18
        %s790 = smul.addr %s789, 8
        %s791 = scalar_lea.vmem %s3, %s790
      $region44: #{tpu_custom_call.1} parent=39 // pred_fallthru
        _
    $region40: #{tpu_custom_call.1} parent=5 // pred_fallthru
      _
  $region6: #{tpu_custom_call.1} parent=0 // loop_footer
    %s13 = sadd.s32 1, %s9
  $region7: #{tpu_custom_call.1} parent=0 // loop_footer_branch
    %8 = sbr.rel target = $region3
  $region8: #{tpu_custom_call.1} parent=0 // loop_exit
    _

</llo_original>
